<compile_context>
chip_gen: v6e
topology: v6e:2x2x1
jax: 0.10.0
libtpu: 0.0.40
codegen_flags: <defaults>
</compile_context>

<pallas_src>
import functools
import math

import jax
import jax.numpy as jnp
from jax import lax
from jax.experimental import pallas as pl
from jax.experimental.pallas import tpu as pltpu

EPS = 1e-12  # parity with the torch module; unused in forward (same as torch)
# TODO(synk): EPS would only matter for a backward/custom_vjp, not implemented here.

_LANE = 128
_SUBLANE = 8
_IN_BUDGET_CAP = 24 * 1024 * 1024  # bytes for 3 inputs x 2 pipeline buffers


def _cdiv(a, b):
    return (a + b - 1) // b


def _round_up(x, m):
    return _cdiv(x, m) * m


def _physical_vmem_bytes():
    """Per-TensorCore physical VMEM; conservative (v7x) fallback."""
    try:
        info = pltpu.get_tpu_info()
        v = getattr(info, "vmem_capacity_bytes", None)
        if v:
            return int(v)
    except Exception:
        pass
    return 64 * 1024 * 1024


def _fold_factor(b, f):
    """For tiny batches, fold feature chunks into rows to fill sublanes."""
    if b >= _SUBLANE:
        return 1
    k = _SUBLANE // math.gcd(b, _SUBLANE)
    if k > 1 and f % (k * _LANE) == 0:
        return k
    return 1


def _select_tiles(b_eff, f_eff, itemsize, in_budget):
    """Pick (Bt, Tf): lane-dense, balanced, no over-padding."""
    per_block = max(in_budget // 6, _SUBLANE * _LANE * itemsize)

    # Feature chunking: multiples of 128 lanes (or the full dim if F < 128),
    # balanced so the last chunk is not tiny.
    if f_eff <= _LANE:
        tf = f_eff
    else:
        groups = _cdiv(f_eff, _LANE)
        rows_min = b_eff if b_eff < _SUBLANE else _SUBLANE
        max_groups = max(per_block // (rows_min * _LANE * itemsize), 1)
        nk = _cdiv(groups, max_groups)
        tf = _cdiv(groups, nk) * _LANE

    # Row blocking against the remaining per-block budget, balanced across
    # blocks; guarantee >=2 blocks when possible so both v7x TCs are busy.
    if b_eff <= _SUBLANE:
        bt = b_eff
    else:
        max_rows = max((per_block // (tf * itemsize)) // _SUBLANE * _SUBLANE,
                       _SUBLANE)
        nb = _cdiv(b_eff, max_rows)
        if nb == 1 and b_eff >= 2 * _SUBLANE:
            nb = 2
        bt = min(_round_up(_cdiv(b_eff, nb), _SUBLANE), max_rows)
    return bt, tf


def _triplet_sum_kernel(a_ref, p_ref, n_ref, out_ref, *, f_valid, tf,
                        multi_chunk, needs_mask):
    """Per-row sum((p-a)^2 - (n-a)^2), accumulated over feature chunks.

    a/p/n refs: (Bt, Tf) tiles in native dtype.
    out_ref:    (Bt, 1) float32 (resident across the feature axis if any).
    """
    a = a_ref[...].astype(jnp.float32)
    p = p_ref[...].astype(jnp.float32)
    n = n_ref[...].astype(jnp.float32)
    # sum(dp) - sum(dn) == sum(dp - dn): single cross-lane reduce per chunk.
    d = (p - a) * (p - a) - (n - a) * (n - a)

    if needs_mask:
        # Last chunk extends past F: DMA only fills the valid lanes, the rest
        # is stale VMEM -> select it away before reducing.
        k = pl.program_id(1) if multi_chunk else 0
        lane = lax.broadcasted_iota(jnp.int32, d.shape, 1)
        d = jnp.where(k * tf + lane < f_valid, d, 0.0)

    partial = jnp.sum(d, axis=1, keepdims=True)

    if multi_chunk:
        k = pl.program_id(1)

        @pl.when(k == 0)
        def _init():
            out_ref[...] = jnp.zeros_like(out_ref)

        out_ref[...] += partial
    else:
        out_ref[...] = partial


def triplet_loss(anchor, positive, negative, *, dim=1, reduction="mean",
                 margin=1.0, batch_mean=True, _in_budget_bytes=None):
    """Pallas implementation of TripletLoss.forward."""
    assert positive.shape == negative.shape, "Invalid tensor size pair."
    assert anchor.shape == positive.shape, "anchor must match positive/negative"
    ndim = anchor.ndim
    assert ndim >= 2 and 1 <= dim < ndim, "dim must index a non-batch axis"

    B = anchor.shape[0]
    F = math.prod(anchor.shape[1:])

    # torch: sum over `dim`, then mean/sum over remaining non-batch dims
    #        == (full non-batch sum) * scale.
    if reduction == "mean":
        denom = math.prod(anchor.shape[i] for i in range(1, ndim) if i != dim)
        scale = 1.0 / float(denom)
    elif reduction == "sum":
        scale = 1.0
    else:
        raise ValueError("Invalid reduction type")

    itemsize = jnp.dtype(anchor.dtype).itemsize

    # Fold tiny batches into rows (free contiguous reshape) to fill sublanes.
    K = _fold_factor(B, F)
    B_eff, F_eff = B * K, F // K

    phys_vmem = _physical_vmem_bytes()
    in_budget = (_in_budget_bytes if _in_budget_bytes is not None
                 else min(phys_vmem // 3, _IN_BUDGET_CAP))

    Bt, Tf = _select_tiles(B_eff, F_eff, itemsize, in_budget)
    nb = _cdiv(B_eff, Bt)
    nk = _cdiv(F_eff, Tf)
    multi_chunk = nk > 1
    needs_mask = (F_eff % Tf) != 0

    kernel = functools.partial(_triplet_sum_kernel, f_valid=F_eff, tf=Tf,
                               multi_chunk=multi_chunk, needs_mask=needs_mask)

    # Metadata-only reshapes; no padding, no extra HBM passes.
    a2 = anchor.reshape(B_eff, F_eff)
    p2 = positive.reshape(B_eff, F_eff)
    n2 = negative.reshape(B_eff, F_eff)

    vmem_used = 6 * Bt * Tf * itemsize + 2 * Bt * 4
    cparams = pltpu.CompilerParams(
        dimension_semantics=(("parallel", "arbitrary") if multi_chunk
                             else ("parallel",)),
        vmem_limit_bytes=int(min(phys_vmem // 2,
                                 max(vmem_used + (4 << 20), 32 << 20))),
    )
    cost = pl.CostEstimate(
        flops=6 * B_eff * F_eff,
        transcendentals=0,
        bytes_accessed=3 * B_eff * F_eff * itemsize + 4 * B_eff,
    )

    if multi_chunk:
        grid = (nb, nk)
        in_spec = pl.BlockSpec((Bt, Tf), lambda b, k: (b, k))
        out_spec = pl.BlockSpec((Bt, 1), lambda b, k: (b, 0))
    else:
        grid = (nb,)
        in_spec = pl.BlockSpec((Bt, Tf), lambda b: (b, 0))
        out_spec = pl.BlockSpec((Bt, 1), lambda b: (b, 0))

    row_sums = pl.pallas_call(
        kernel,
        out_shape=jax.ShapeDtypeStruct((B_eff, 1), jnp.float32),
        grid=grid,
        in_specs=[in_spec, in_spec, in_spec],
        out_specs=out_spec,
        compiler_params=cparams,
        cost_estimate=cost,
    )(a2, p2, n2)

    # Tiny (B,)-sized epilogue in plain JAX: recombine folded partials, then
    # scale + margin + relu (+ batch mean).
    per_example = row_sums.reshape(B, K).sum(axis=1)
    loss = jnp.maximum(per_example * scale + margin, 0.0)
    if batch_mean:
        return jnp.mean(loss, axis=0)
    return loss


def _reference(anchor, positive, negative, *, reduction="mean", margin=1.0,
               batch_mean=True):
    lp = jnp.sum((positive - anchor) ** 2, axis=1)
    ln = jnp.sum((negative - anchor) ** 2, axis=1)
    red_axes = tuple(range(1, lp.ndim))
    if red_axes:
        if reduction == "mean":
            lp = jnp.mean(lp, axis=red_axes)
            ln = jnp.mean(ln, axis=red_axes)
        else:
            lp = jnp.sum(lp, axis=red_axes)
            ln = jnp.sum(ln, axis=red_axes)
    loss = jnp.maximum(lp + margin - ln, 0.0)
    return jnp.mean(loss, axis=0) if batch_mean else loss


if __name__ == "__main__":
    key = jax.random.PRNGKey(0)
    ks = jax.random.split(key, 9)

    # --- test 1: module-sized NCHW input, 'mean', batch_mean ---------------
    # B=2 < 8 -> small-batch fold (2,1024) -> (8,256); single-chunk 1-D grid.
    B, C, H, W = 2, 4, 16, 16
    a = jax.random.normal(ks[0], (B, C, H, W), dtype=jnp.float32)
    p = jax.random.normal(ks[1], (B, C, H, W), dtype=jnp.float32)
    n = jax.random.normal(ks[2], (B, C, H, W), dtype=jnp.float32)
    out = jax.block_until_ready(
        triplet_loss(a, p, n, reduction="mean", margin=1.0, batch_mean=True))
    ref = _reference(a, p, n, reduction="mean", margin=1.0, batch_mean=True)
    assert out.shape == ref.shape == ()
    assert jnp.allclose(out, ref, rtol=1e-5, atol=1e-5), (out, ref)

    # --- test 2: no fold (F not divisible), single chunk covering F=4608,
    #             'sum' reduction, per-sample output --------------------------
    B2, C2, H2, W2 = 3, 8, 24, 24
    a2 = jax.random.normal(ks[3], (B2, C2, H2, W2), dtype=jnp.float32)
    p2 = jax.random.normal(ks[4], (B2, C2, H2, W2), dtype=jnp.float32)
    n2 = jax.random.normal(ks[5], (B2, C2, H2, W2), dtype=jnp.float32)
    out2 = jax.block_until_ready(
        triplet_loss(a2, p2, n2, reduction="sum", margin=1.0, batch_mean=False))
    ref2 = _reference(a2, p2, n2, reduction="sum", margin=1.0, batch_mean=False)
    assert out2.shape == ref2.shape == (B2,)
    assert jnp.allclose(out2, ref2, rtol=1e-4, atol=1e-3), (out2, ref2)

    # --- test 3: forced tiny VMEM budget -> multi-chunk reduction axis with
    #             a non-128-aligned F (lane mask) and B not multiple of 8 ----
    B3, C3, H3, W3 = 5, 3, 9, 10   # F = 270 -> chunks of 128, masked tail
    a3 = jax.random.normal(ks[6], (B3, C3, H3, W3), dtype=jnp.float32)
    p3 = jax.random.normal(ks[7], (B3, C3, H3, W3), dtype=jnp.float32)
    n3 = jax.random.normal(ks[8], (B3, C3, H3, W3), dtype=jnp.float32)
    out3 = jax.block_until_ready(
        triplet_loss(a3, p3, n3, reduction="mean", margin=1.0,
                     batch_mean=True, _in_budget_bytes=6 * 4096))
    ref3 = _reference(a3, p3, n3, reduction="mean", margin=1.0, batch_mean=True)
    assert out3.shape == ref3.shape == ()
    assert jnp.allclose(out3, ref3, rtol=1e-5, atol=1e-5), (out3, ref3)

    print("KERNEL_OK")
</pallas_src>

<mosaic_0001>
module attributes {stable_mosaic.version = 11 : i64} {
  func.func @_triplet_sum_kernel(%arg0: i32, %arg1: memref<8x256xf32, #tpu.memory_space<vmem>>, %arg2: memref<8x256xf32, #tpu.memory_space<vmem>>, %arg3: memref<8x256xf32, #tpu.memory_space<vmem>>, %arg4: memref<8x1xf32, #tpu.memory_space<vmem>>) attributes {dimension_semantics = [#tpu.dimension_semantics<parallel>], iteration_bounds = array<i64: 1>, scalar_prefetch = 0 : i64, scratch_operands = 0 : i64, tpu.core_type = #tpu.core_type<tc>, window_params = [{transform_indices = @transform_0, window_bounds = array<i64: 8, 256>}, {transform_indices = @transform_1, window_bounds = array<i64: 8, 256>}, {transform_indices = @transform_2, window_bounds = array<i64: 8, 256>}, {transform_indices = @transform_3, window_bounds = array<i64: 8, 1>}]} {
    %c0 = arith.constant 0 : index
    %c0_0 = arith.constant 0 : index
    %0 = vector.load %arg1[%c0, %c0_0] : memref<8x256xf32, #tpu.memory_space<vmem>>, vector<8x256xf32>
    %c0_1 = arith.constant 0 : index
    %c0_2 = arith.constant 0 : index
    %1 = vector.load %arg2[%c0_1, %c0_2] : memref<8x256xf32, #tpu.memory_space<vmem>>, vector<8x256xf32>
    %c0_3 = arith.constant 0 : index
    %c0_4 = arith.constant 0 : index
    %2 = vector.load %arg3[%c0_3, %c0_4] : memref<8x256xf32, #tpu.memory_space<vmem>>, vector<8x256xf32>
    %3 = arith.subf %1, %0 : vector<8x256xf32>
    %4 = arith.subf %1, %0 : vector<8x256xf32>
    %5 = arith.mulf %3, %4 : vector<8x256xf32>
    %6 = arith.subf %2, %0 : vector<8x256xf32>
    %7 = arith.subf %2, %0 : vector<8x256xf32>
    %8 = arith.mulf %6, %7 : vector<8x256xf32>
    %9 = arith.subf %5, %8 : vector<8x256xf32>
    %cst = arith.constant dense<0.000000e+00> : vector<8xf32>
    %10 = vector.multi_reduction <add>, %9, %cst [1] : vector<8x256xf32> to vector<8xf32>
    %11 = vector.shape_cast %10 : vector<8xf32> to vector<8x1xf32>
    %c0_5 = arith.constant 0 : index
    %c0_6 = arith.constant 0 : index
    %12 = vector.load %arg4[%c0_5, %c0_6] : memref<8x1xf32, #tpu.memory_space<vmem>>, vector<8x1xf32>
    tpu.vector_store %arg4[%c0_5, %c0_6], %11 {strides = array<i32>} : memref<8x1xf32, #tpu.memory_space<vmem>>, vector<8x1xf32>,
    return
  }
  func.func @transform_0(%arg0: i32) -> (i32, i32) {
    %c0_i32 = arith.constant 0 : i32
    %c0_i32_0 = arith.constant 0 : i32
    return %arg0, %c0_i32 : i32, i32
  }
  func.func @transform_1(%arg0: i32) -> (i32, i32) {
    %c0_i32 = arith.constant 0 : i32
    %c0_i32_0 = arith.constant 0 : i32
    return %arg0, %c0_i32 : i32, i32
  }
  func.func @transform_2(%arg0: i32) -> (i32, i32) {
    %c0_i32 = arith.constant 0 : i32
    %c0_i32_0 = arith.constant 0 : i32
    return %arg0, %c0_i32 : i32, i32
  }
  func.func @transform_3(%arg0: i32) -> (i32, i32) {
    %c0_i32 = arith.constant 0 : i32
    %c0_i32_0 = arith.constant 0 : i32
    return %arg0, %c0_i32 : i32, i32
  }
}

</mosaic_0001>

<llo_original>
// kernel: tpu_custom_call.1
$region0: #{tpu_custom_call.1}
  #allocation0 [shape = 'u32[]', space=smem, size = 0x4, offset = 0x4, fixed_abs, tag = 'smem constant byte address 0x4 - core index']
  #allocation1 [shape = 'u32[144,128]{1,0:T(1,128)}', space=vmem, size = 0x12000, scoped, tag = 'internal scratch']
  %s0 = inlined_call_operand.hbm [shape: f32[8,256], index: 0, kind: input, shape index: {}]
  %s1 = inlined_call_operand.hbm [shape: f32[8,256], index: 1, kind: input, shape index: {}]
  %s2 = inlined_call_operand.hbm [shape: f32[8,256], index: 2, kind: input, shape index: {}]
  %s3 = inlined_call_operand.vmem [shape: f32[8,1], index: 3, kind: output, shape index: {}]
  %s4 = sld [smem:[#allocation0]]
  $region34: #{tpu_custom_call.1} parent=0
    _
  %s6 = ssub.s32 1, %s4
  %s7 = scalar_select 0, %s6, %s4
  $region1: #{tpu_custom_call.1} parent=0
    #allocation2 [shape = 'u8[8192]{0}', space=vmem, size = 0x2000, scoped, tag = 'input window, operand 0, single buffered']
    #allocation3 [shape = 's32[1]{0}', space=sflag, size = 0x4, scoped, tag = 'scoped memory for tpu_custom_call.1']
    #allocation4 [shape = 'u8[8192]{0}', space=vmem, size = 0x2000, scoped, tag = 'input window, operand 1, single buffered']
    #allocation5 [shape = 's32[1]{0}', space=sflag, size = 0x4, scoped, tag = 'scoped memory for tpu_custom_call.1']
    #allocation6 [shape = 'u8[8192]{0}', space=vmem, size = 0x2000, scoped, tag = 'input window, operand 2, single buffered']
    %8 = vsyncpa [#allocation3], 0
    %9 = vsyncpa [#allocation5], 0
    // Predicated region
    $region2: #{tpu_custom_call.1} parent=1 // pred_check
      _
    $region3: #{tpu_custom_call.1} parent=1 // pred_check_branch
      %11 = sbr.rel (0) target = $region5
    $region4: #{tpu_custom_call.1} parent=1 // pred_region
      %s13 = ssub.s32 256, 256
      %14 = vsyncadd [#allocation3], %s13
      %s16 = sshll.u32 [#allocation2], 4
      %s17 = int_to_ptr.vmem [resolvable:$true] %s16
      %19 = dma.hbm_to_vmem [thread:$0]  %s0, 256, %s17, [#allocation3]
    $region5: #{tpu_custom_call.1} parent=1 // pred_fallthru
      _
    // Predicated region
    $region6: #{tpu_custom_call.1} parent=1 // pred_check
      _
    $region7: #{tpu_custom_call.1} parent=1 // pred_check_branch
      %21 = sbr.rel (0) target = $region9
    $region8: #{tpu_custom_call.1} parent=1 // pred_region
      %s23 = ssub.s32 256, 256
      %24 = vsyncadd [#allocation5], %s23
      %s26 = sshll.u32 [#allocation4], 4
      %s27 = int_to_ptr.vmem [resolvable:$true] %s26
      %29 = dma.hbm_to_vmem [thread:$0]  %s1, 256, %s27, [#allocation5]
    $region9: #{tpu_custom_call.1} parent=1 // pred_fallthru
      _
    // Predicated region
    $region10: #{tpu_custom_call.1} parent=1 // pred_check
      _
    $region11: #{tpu_custom_call.1} parent=1 // pred_check_branch
      %31 = sbr.rel (0) target = $region13
    $region12: #{tpu_custom_call.1} parent=1 // pred_region
      %s33 = ssub.s32 256, 256
      %34 = vsyncadd [#allocation5], %s33
      %s36 = sshll.u32 [#allocation6], 4
      %s37 = int_to_ptr.vmem [resolvable:$true] %s36
      %39 = dma.hbm_to_vmem [thread:$0]  %s2, 256, %s37, [#allocation5]
    $region13: #{tpu_custom_call.1} parent=1 // pred_fallthru
      _
    // Predicated region
    $region14: #{tpu_custom_call.1} parent=1 // pred_check
      _
    $region15: #{tpu_custom_call.1} parent=1 // pred_check_branch
      %41 = sbr.rel (0) target = $region17
    $region16: #{tpu_custom_call.1} parent=1 // pred_region
      %42 = dma.done [#allocation3], 256
    $region17: #{tpu_custom_call.1} parent=1 // pred_fallthru
      _
    // Predicated region
    $region18: #{tpu_custom_call.1} parent=1 // pred_check
      _
    $region19: #{tpu_custom_call.1} parent=1 // pred_check_branch
      %44 = sbr.rel (0) target = $region21
    $region20: #{tpu_custom_call.1} parent=1 // pred_region
      %45 = dma.done [#allocation5], 256
    $region21: #{tpu_custom_call.1} parent=1 // pred_fallthru
      _
    // Predicated region
    $region22: #{tpu_custom_call.1} parent=1 // pred_check
      _
    $region23: #{tpu_custom_call.1} parent=1 // pred_check_branch
      %47 = sbr.rel (0) target = $region25
    $region24: #{tpu_custom_call.1} parent=1 // pred_region
      %48 = dma.done [#allocation5], 256
    $region25: #{tpu_custom_call.1} parent=1 // pred_fallthru
      _
    %v49 = vld [vmem:[#allocation2] sm:$0xff]
    %v50 = vld [vmem:[#allocation2 + $0x8] sm:$0xff]
    %v51 = vld [vmem:[#allocation4] sm:$0xff]
    %v52 = vld [vmem:[#allocation4 + $0x8] sm:$0xff]
    %v53 = vld [vmem:[#allocation6] sm:$0xff]
    %v54 = vld [vmem:[#allocation6 + $0x8] sm:$0xff]
    %v55 = vsub.f32 %v51, %v49
    %v56 = vsub.f32 %v52, %v50
    %v57 = vmul.f32 %v55, %v55
    %v58 = vmul.f32 %v56, %v56
    %v59 = vsub.f32 %v53, %v49
    %v60 = vsub.f32 %v54, %v50
    %v61 = vmul.f32 %v59, %v59
    %v62 = vmul.f32 %v60, %v60
    %v63 = vsub.f32 %v57, %v61
    %v64 = vsub.f32 %v58, %v62
    %v65 = vadd.f32 %v63, %v64
    %66 = vadd.xlane.f32.xlu0 %v65
    %v67 = vpop.xlane.xlu0 %66
    %vm68 = vcmask 7168
    %69 = vst.msk [vmem:[%s3] sm:$0xff] %vm68, %v67
    // Predicated region
    $region26: #{tpu_custom_call.1} parent=1 // pred_check
      _
    $region27: #{tpu_custom_call.1} parent=1 // pred_check_branch
      %71 = sbr.rel (0) target = $region29
    $region28: #{tpu_custom_call.1} parent=1 // pred_region
      _
    $region29: #{tpu_custom_call.1} parent=1 // pred_fallthru
      _
    // Predicated region
    $region30: #{tpu_custom_call.1} parent=1 // pred_check
      _
    $region31: #{tpu_custom_call.1} parent=1 // pred_check_branch
      %73 = sbr.rel (0) target = $region33
    $region32: #{tpu_custom_call.1} parent=1 // pred_region
      _
    $region33: #{tpu_custom_call.1} parent=1 // pred_fallthru
      _
    %74 = vsyncpa [#allocation3], 1
    %75 = vsyncpa [#allocation5], 1

</llo_original>
